<compile_context>
chip_gen: v5e
topology: v5e:2x2
jax: 0.10.0
libtpu: 0.0.40
codegen_flags: <defaults>
</compile_context>

<pallas_src>
import math

import jax
import jax.numpy as jnp
from jax.experimental import pallas as pl
from jax.experimental.pallas import tpu as pltpu


def _round_up(n, m):
    return -(-n // m) * m


def _additive_attention_kernel(x_ref, m_ref, w_ref, b_ref, v_ref, o_ref):
    TB, S = m_ref.shape                 # static block shape (batch tile, seq)
    A = w_ref.shape[1]                  # padded attention dim (multiple of 128)

    # Projection + tanh on the (TB*S, D) slab -> real MXU M dimension,
    # native-dtype matmul with f32 accumulation.
    proj = jnp.tanh(
        jnp.dot(x_ref[...], w_ref[...], preferred_element_type=jnp.float32)
        + b_ref[...]
    )                                                   # (TB*S, A) f32

    # Context-vector score: VPU multiply by broadcast v row + lane reduction
    # over A (avoids an N=1 MXU matmul).  The reshape only splits the leading
    # (sublane) dim; when S is a multiple of the sublane pack it is free.
    weighted = proj * v_ref[...]                        # (TB*S, A) f32
    scores = jnp.sum(weighted.reshape(TB, S, A), axis=-1)   # (TB, S), seq on lanes

    # masked_fill(~mask, -1e9)  (mask is float; nonzero == attend).
    scores = jnp.where(m_ref[...] != 0.0, scores, jnp.float32(-1000000000.0))

    # Softmax over the sequence axis (lane axis => fast lane reductions).
    s_max = jnp.max(scores, axis=-1, keepdims=True)     # (TB, 1)
    e = jnp.exp(scores - s_max)                         # (TB, S)
    denom = jnp.sum(e, axis=-1, keepdims=True)          # (TB, 1)
    o_ref[...] = (e * pl.reciprocal(denom, approx=False)).astype(o_ref.dtype)


def additive_attention(x, mask, w_proj, b_proj, v_ctx, *, batch_tile=None,
                       compute_dtype=jnp.bfloat16):
    """
    Args:
      x:      (B, S, D) float
      mask:   (B, S)    float/bool (nonzero = keep)
      w_proj: (A, D)    float32  (PyTorch nn.Linear weight layout)
      b_proj: (A,)      float32
      v_ctx:  (1, A)    float32  (PyTorch nn.Linear weight layout, no bias)
      compute_dtype: dtype x and W are streamed/multiplied in.  Default bf16
        (the kernel is HBM-bound on x; ~1e-3..1e-2 effect on the weights).
        Pass jnp.float32 for bit-faithful PyTorch semantics.
    Returns:
      attn_weights: (B, S, 1) float32
    """
    x = jnp.asarray(x)
    B, S, D = x.shape
    A = w_proj.shape[0]

    cdt = jnp.dtype(compute_dtype) if compute_dtype is not None else jnp.dtype(x.dtype)
    x = x.astype(cdt)
    x_itemsize = cdt.itemsize

    # Pad attention dim to a multiple of 128 so proj tiles are lane-dense.
    # Zero-padded columns: tanh(x@0 + 0) * 0 == 0 -> score unchanged.
    A_pad = _round_up(A, 128)
    w_t = jnp.zeros((D, A_pad), cdt).at[:, :A].set(jnp.asarray(w_proj, cdt).T)
    # bias / context vector stay f32 (tiny; combined with the f32 proj slab).
    b2d = jnp.zeros((1, A_pad), jnp.float32).at[:, :A].set(
        jnp.asarray(b_proj, jnp.float32).reshape(1, A))
    v2d = jnp.zeros((1, A_pad), jnp.float32).at[:, :A].set(
        jnp.asarray(v_ctx, jnp.float32).reshape(1, A))

    # Lane-dense mask: (B, S), seq on the last (lane) dim.
    m2d = jnp.asarray(mask, jnp.float32).reshape(B, S)

    # Batch tile: VMEM-budgeted (x double-buffered + f32 proj/weighted slabs),
    # aligned so TB and TB*S are sublane-friendly for bf16 and f32, and capped
    # at ceil(B/2) so the grid keeps >= 2 steps for megacore when B is large.
    TILE_ALIGN = 16
    if batch_tile is None:
        per_row = S * (2 * D * x_itemsize + 3 * A_pad * 4 + 32)  # bytes per batch row
        vmem_target = 24 << 20
        tb_vmem = max(TILE_ALIGN,
                      (vmem_target // per_row) // TILE_ALIGN * TILE_ALIGN)
        tb_half = _round_up(max(1, -(-B // 2)), TILE_ALIGN)
        TB = int(min(tb_vmem, tb_half))
    else:
        TB = _round_up(max(1, int(batch_tile)), TILE_ALIGN)

    # Pad batch to a multiple of TB (padded rows are fully masked -> uniform
    # weights, sliced off below; no NaNs possible).
    B_pad = _round_up(B, TB)
    if B_pad != B:
        x = jnp.pad(x, ((0, B_pad - B), (0, 0), (0, 0)))
        m2d = jnp.pad(m2d, ((0, B_pad - B), (0, 0)))

    # Free HBM metadata reshape: contiguous 2-D tiles for the x DMA.
    x_flat = x.reshape(B_pad * S, D)

    # Explicit scoped-VMEM budget: 2x x block + W + f32 proj/weighted spill
    # headroom + mask/out.  Raised above v5e's 16 MiB default, clamped well
    # under v7x's 64 MiB physical.
    x_block = TB * S * D * x_itemsize
    proj_block = TB * S * A_pad * 4
    budget = (2 * x_block + 3 * proj_block + 2 * D * A_pad * x_itemsize
              + 4 * TB * S * 4 + 4 * A_pad * 4 + (2 << 20))
    vmem_limit = int(min(max(budget, 32 << 20), 56 << 20))

    out2d = pl.pallas_call(
        _additive_attention_kernel,
        out_shape=jax.ShapeDtypeStruct((B_pad, S), jnp.float32),
        grid_spec=pltpu.PrefetchScalarGridSpec(
            num_scalar_prefetch=0,
            grid=(B_pad // TB,),
            in_specs=[
                pl.BlockSpec((TB * S, D), lambda i: (i, 0)),   # x (flattened)
                pl.BlockSpec((TB, S), lambda i: (i, 0)),       # mask
                pl.BlockSpec((D, A_pad), lambda i: (0, 0)),    # W^T (padded)
                pl.BlockSpec((1, A_pad), lambda i: (0, 0)),    # bias (padded)
                pl.BlockSpec((1, A_pad), lambda i: (0, 0)),    # context vector
            ],
            out_specs=pl.BlockSpec((TB, S), lambda i: (i, 0)),
        ),
        compiler_params=pltpu.CompilerParams(
            dimension_semantics=("parallel",),
            vmem_limit_bytes=vmem_limit,
        ),
    )(x_flat, m2d, w_t, b2d, v2d)

    # Wrapper-side layout plumbing: back to the PyTorch (B, S, 1) shape.
    return out2d[:B].reshape(B, S, 1)


def _reference(x, mask, w_proj, b_proj, v_ctx):
    # Pure-JAX reference matching the PyTorch forward exactly (f32).
    x_proj = jnp.tanh(jnp.einsum("bsd,ad->bsa", x, w_proj) + b_proj)
    scores = jnp.einsum("bsa,oa->bso", x_proj, v_ctx)          # (B, S, 1)
    attn_mask = mask[..., None].astype(bool)
    scores = jnp.where(attn_mask, scores, -1000000000.0)
    return jax.nn.softmax(scores, axis=1)


if __name__ == "__main__":
    key = jax.random.PRNGKey(0)
    B, S, D, A = 2, 8, 32, 16   # batch, seq_len, input_dim, attention_dim

    k_x, k_w, k_b, k_v = jax.random.split(key, 4)
    x = jax.random.normal(k_x, (B, S, D), dtype=jnp.float32)

    # Deterministic parameter init (synthetic; mimics nn.Linear shapes).
    bound_w = 1.0 / math.sqrt(D)
    w_proj = jax.random.uniform(k_w, (A, D), jnp.float32, -bound_w, bound_w)
    b_proj = jax.random.uniform(k_b, (A,), jnp.float32, -bound_w, bound_w)
    bound_v = 1.0 / math.sqrt(A)
    v_ctx = jax.random.uniform(k_v, (1, A), jnp.float32, -bound_v, bound_v)

    # Mask: 1 = attend, 0 = pad (zero out the tail of each sequence).
    lengths = jnp.array([S, S - 3])
    mask = (jnp.arange(S)[None, :] < lengths[:, None]).astype(jnp.float32)

    ref = _reference(x, mask, w_proj, b_proj, v_ctx)

    # 1) Exact-semantics path (f32 compute) -- tight tolerance.
    out_f32 = jax.block_until_ready(
        additive_attention(x, mask, w_proj, b_proj, v_ctx,
                           compute_dtype=jnp.float32))
    assert out_f32.shape == (B, S, 1)
    assert jnp.allclose(out_f32, ref, atol=1e-5, rtol=1e-5), (
        f"f32 path max abs err {jnp.max(jnp.abs(out_f32 - ref))}")

    # 2) Default fast path (bf16 streaming of x / W) -- relaxed tolerance.
    out_bf16 = jax.block_until_ready(
        additive_attention(x, mask, w_proj, b_proj, v_ctx))
    assert out_bf16.shape == (B, S, 1)
    assert jnp.allclose(out_bf16, ref, atol=2e-2), (
        f"bf16 path max abs err {jnp.max(jnp.abs(out_bf16 - ref))}")
    # Attention weights over valid positions must sum to 1 per batch.
    assert jnp.allclose(jnp.sum(out_f32, axis=1), 1.0, atol=1e-5)
    assert jnp.allclose(jnp.sum(out_bf16, axis=1), 1.0, atol=1e-3)

    print("KERNEL_OK")
</pallas_src>

<mosaic_0001>
module attributes {stable_mosaic.version = 11 : i64} {
  func.func @_additive_attention_kernel(%arg0: i32, %arg1: memref<128x32xf32, #tpu.memory_space<vmem>>, %arg2: memref<16x8xf32, #tpu.memory_space<vmem>>, %arg3: memref<32x128xf32, #tpu.memory_space<vmem>>, %arg4: memref<1x128xf32, #tpu.memory_space<vmem>>, %arg5: memref<1x128xf32, #tpu.memory_space<vmem>>, %arg6: memref<16x8xf32, #tpu.memory_space<vmem>>) attributes {dimension_semantics = [#tpu.dimension_semantics<parallel>], iteration_bounds = array<i64: 1>, scalar_prefetch = 0 : i64, scratch_operands = 0 : i64, tpu.core_type = #tpu.core_type<tc>, window_params = [{transform_indices = @transform_0, window_bounds = array<i64: 128, 32>}, {transform_indices = @transform_1, window_bounds = array<i64: 16, 8>}, {pipeline_mode = #tpu.pipeline_mode<synchronous>, transform_indices = @transform_2, window_bounds = array<i64: 32, 128>}, {pipeline_mode = #tpu.pipeline_mode<synchronous>, transform_indices = @transform_3, window_bounds = array<i64: 1, 128>}, {pipeline_mode = #tpu.pipeline_mode<synchronous>, transform_indices = @transform_4, window_bounds = array<i64: 1, 128>}, {transform_indices = @transform_5, window_bounds = array<i64: 16, 8>}]} {
    %c0 = arith.constant 0 : index
    %c0_0 = arith.constant 0 : index
    %0 = vector.load %arg1[%c0, %c0_0] : memref<128x32xf32, #tpu.memory_space<vmem>>, vector<128x32xf32>
    %c0_1 = arith.constant 0 : index
    %c0_2 = arith.constant 0 : index
    %1 = vector.load %arg3[%c0_1, %c0_2] : memref<32x128xf32, #tpu.memory_space<vmem>>, vector<32x128xf32>
    %cst = arith.constant dense<0.000000e+00> : vector<128x128xf32>
    %2 = tpu.matmul %0, %1, %cst {dimension_numbers = #tpu.dot_dimension_numbers<[1], [0], [0], [1], [0, 0, 1, 1], [], []>} : vector<128x32xf32>, vector<32x128xf32>, vector<128x128xf32> -> vector<128x128xf32>
    %c0_3 = arith.constant 0 : index
    %c0_4 = arith.constant 0 : index
    %3 = vector.load %arg4[%c0_3, %c0_4] : memref<1x128xf32, #tpu.memory_space<vmem>>, vector<1x128xf32>
    %4 = vector.broadcast %3 : vector<1x128xf32> to vector<128x128xf32>
    %5 = arith.addf %2, %4 : vector<128x128xf32>
    %6 = math.tanh %5 : vector<128x128xf32>
    %c0_5 = arith.constant 0 : index
    %c0_6 = arith.constant 0 : index
    %7 = vector.load %arg5[%c0_5, %c0_6] : memref<1x128xf32, #tpu.memory_space<vmem>>, vector<1x128xf32>
    %8 = vector.broadcast %7 : vector<1x128xf32> to vector<128x128xf32>
    %9 = arith.mulf %6, %8 : vector<128x128xf32>
    %10 = vector.shape_cast %9 : vector<128x128xf32> to vector<16x8x128xf32>
    %cst_7 = arith.constant dense<0.000000e+00> : vector<16x8xf32>
    %11 = vector.multi_reduction <add>, %10, %cst_7 [2] : vector<16x8x128xf32> to vector<16x8xf32>
    %c0_8 = arith.constant 0 : index
    %c0_9 = arith.constant 0 : index
    %12 = vector.load %arg2[%c0_8, %c0_9] : memref<16x8xf32, #tpu.memory_space<vmem>>, vector<16x8xf32>
    %cst_10 = arith.constant 0.000000e+00 : f32
    %13 = vector.broadcast %cst_10 : f32 to vector<16x8xf32>
    %14 = arith.cmpf one, %12, %13 : vector<16x8xf32>
    %cst_11 = arith.constant -1.000000e+09 : f32
    %15 = vector.broadcast %cst_11 : f32 to vector<16x8xf32>
    %16 = arith.select %14, %11, %15 : vector<16x8xi1>, vector<16x8xf32>
    %cst_12 = arith.constant dense<0xFF800000> : vector<16xf32>
    %17 = vector.multi_reduction <maximumf>, %16, %cst_12 [1] : vector<16x8xf32> to vector<16xf32>
    %18 = vector.shape_cast %17 : vector<16xf32> to vector<16x1xf32>
    %19 = vector.broadcast %18 : vector<16x1xf32> to vector<16x8xf32>
    %20 = arith.subf %16, %19 : vector<16x8xf32>
    %21 = math.exp %20 : vector<16x8xf32>
    %cst_13 = arith.constant dense<0.000000e+00> : vector<16xf32>
    %22 = vector.multi_reduction <add>, %21, %cst_13 [1] : vector<16x8xf32> to vector<16xf32>
    %23 = vector.shape_cast %22 : vector<16xf32> to vector<16x1xf32>
    %24 = tpu.reciprocal %23 : vector<16x1xf32> -> vector<16x1xf32>
    %25 = vector.broadcast %24 : vector<16x1xf32> to vector<16x8xf32>
    %26 = arith.mulf %21, %25 : vector<16x8xf32>
    %c0_14 = arith.constant 0 : index
    %c0_15 = arith.constant 0 : index
    %27 = vector.load %arg6[%c0_14, %c0_15] : memref<16x8xf32, #tpu.memory_space<vmem>>, vector<16x8xf32>
    tpu.vector_store %arg6[%c0_14, %c0_15], %26 {strides = array<i32>} : memref<16x8xf32, #tpu.memory_space<vmem>>, vector<16x8xf32>,
    return
  }
  func.func @transform_0(%arg0: i32) -> (i32, i32) {
    %c0_i32 = arith.constant 0 : i32
    %c0_i32_0 = arith.constant 0 : i32
    return %arg0, %c0_i32 : i32, i32
  }
  func.func @transform_1(%arg0: i32) -> (i32, i32) {
    %c0_i32 = arith.constant 0 : i32
    %c0_i32_0 = arith.constant 0 : i32
    return %arg0, %c0_i32 : i32, i32
  }
  func.func @transform_2(%arg0: i32) -> (i32, i32) {
    %c0_i32 = arith.constant 0 : i32
    %c0_i32_0 = arith.constant 0 : i32
    %c0_i32_1 = arith.constant 0 : i32
    return %c0_i32, %c0_i32_0 : i32, i32
  }
  func.func @transform_3(%arg0: i32) -> (i32, i32) {
    %c0_i32 = arith.constant 0 : i32
    %c0_i32_0 = arith.constant 0 : i32
    %c0_i32_1 = arith.constant 0 : i32
    return %c0_i32, %c0_i32_0 : i32, i32
  }
  func.func @transform_4(%arg0: i32) -> (i32, i32) {
    %c0_i32 = arith.constant 0 : i32
    %c0_i32_0 = arith.constant 0 : i32
    %c0_i32_1 = arith.constant 0 : i32
    return %c0_i32, %c0_i32_0 : i32, i32
  }
  func.func @transform_5(%arg0: i32) -> (i32, i32) {
    %c0_i32 = arith.constant 0 : i32
    %c0_i32_0 = arith.constant 0 : i32
    return %arg0, %c0_i32 : i32, i32
  }
}

</mosaic_0001>

<llo_original>
// kernel: tpu_custom_call.1
$region0: #{tpu_custom_call.1}
  #allocation0 [shape = 'u32[]', space=smem, size = 0x4, offset = 0x4, fixed_abs, tag = 'smem constant byte address 0x4 - core index']
  #allocation1 [shape = 'u32[72,128]{1,0:T(1,128)}', space=vmem, size = 0x9000, scoped, tag = 'internal scratch']
  %s0 = inlined_call_operand.vmem [shape: f32[128,32], index: 0, kind: input, shape index: {}]
  %s1 = inlined_call_operand.vmem [shape: f32[16,8], index: 1, kind: input, shape index: {}]
  %s2 = inlined_call_operand.vmem [shape: f32[32,128], index: 2, kind: input, shape index: {}]
  %s3 = inlined_call_operand.vmem [shape: f32[1,128], index: 3, kind: input, shape index: {}]
  %s4 = inlined_call_operand.vmem [shape: f32[1,128], index: 4, kind: input, shape index: {}]
  %s5 = inlined_call_operand.vmem [shape: f32[16,8], index: 5, kind: output, shape index: {}]
  %s6 = sld [smem:[#allocation0]]
  $region30: #{tpu_custom_call.1} parent=0
    _
  %s8 = ssub.s32 1, %s6
  %s9 = scalar_select 0, %s8, %s6
  // Predicated region
  $region2: #{tpu_custom_call.1} parent=0 // pred_check
    _
  $region3: #{tpu_custom_call.1} parent=0 // pred_check_branch
    %11 = sbr.rel (0) target = $region5
  $region4: #{tpu_custom_call.1} parent=0 // pred_region
    _
  $region5: #{tpu_custom_call.1} parent=0 // pred_fallthru
    _
  // Predicated region
  $region6: #{tpu_custom_call.1} parent=0 // pred_check
    _
  $region7: #{tpu_custom_call.1} parent=0 // pred_check_branch
    %13 = sbr.rel (0) target = $region9
  $region8: #{tpu_custom_call.1} parent=0 // pred_region
    _
  $region9: #{tpu_custom_call.1} parent=0 // pred_fallthru
    _
  // Predicated region
  $region10: #{tpu_custom_call.1} parent=0 // pred_check
    _
  $region11: #{tpu_custom_call.1} parent=0 // pred_check_branch
    %15 = sbr.rel (0) target = $region13
  $region12: #{tpu_custom_call.1} parent=0 // pred_region
    _
  $region13: #{tpu_custom_call.1} parent=0 // pred_fallthru
    _
  // Predicated region
  $region14: #{tpu_custom_call.1} parent=0 // pred_check
    _
  $region15: #{tpu_custom_call.1} parent=0 // pred_check_branch
    %17 = sbr.rel (0) target = $region17
  $region16: #{tpu_custom_call.1} parent=0 // pred_region
    _
  $region17: #{tpu_custom_call.1} parent=0 // pred_fallthru
    _
  // Predicated region
  $region18: #{tpu_custom_call.1} parent=0 // pred_check
    _
  $region19: #{tpu_custom_call.1} parent=0 // pred_check_branch
    %19 = sbr.rel (0) target = $region21
  $region20: #{tpu_custom_call.1} parent=0 // pred_region
    _
  $region21: #{tpu_custom_call.1} parent=0 // pred_fallthru
    _
  %v20 = vld [vmem:[%s0] sm:$0xff]
  %v21 = vld [vmem:[%s0 + $0x8] sm:$0xff]
  %v22 = vld [vmem:[%s0 + $0x10] sm:$0xff]
  %v23 = vld [vmem:[%s0 + $0x18] sm:$0xff]
  %v24 = vld [vmem:[%s0 + $0x20] sm:$0xff]
  %v25 = vld [vmem:[%s0 + $0x28] sm:$0xff]
  %v26 = vld [vmem:[%s0 + $0x30] sm:$0xff]
  %v27 = vld [vmem:[%s0 + $0x38] sm:$0xff]
  %v28 = vld [vmem:[%s0 + $0x40] sm:$0xff]
  %v29 = vld [vmem:[%s0 + $0x48] sm:$0xff]
  %v30 = vld [vmem:[%s0 + $0x50] sm:$0xff]
  %v31 = vld [vmem:[%s0 + $0x58] sm:$0xff]
  %v32 = vld [vmem:[%s0 + $0x60] sm:$0xff]
  %v33 = vld [vmem:[%s0 + $0x68] sm:$0xff]
  %v34 = vld [vmem:[%s0 + $0x70] sm:$0xff]
  %v35 = vld [vmem:[%s0 + $0x78] sm:$0xff]
  %v36 = vld [vmem:[%s2] sm:$0xff]
  %v37 = vld [vmem:[%s2 + $0x8] sm:$0xff]
  %v38 = vld [vmem:[%s2 + $0x10] sm:$0xff]
  %v39 = vld [vmem:[%s2 + $0x18] sm:$0xff]
  %v40 = vld [vmem:[%s3] sm:$0x1]
  %v42 = vperm.slane %v40, 0
  %vm44 = vcmask 261120
  %v46 = vsel %vm44, %v20, 0
  %v49 = vsel %vm44, %v21, 0
  %v52 = vsel %vm44, %v22, 0
  %v55 = vsel %vm44, %v23, 0
  %v58 = vsel %vm44, %v24, 0
  %v61 = vsel %vm44, %v25, 0
  %v64 = vsel %vm44, %v26, 0
  %v67 = vsel %vm44, %v27, 0
  %v70 = vsel %vm44, %v28, 0
  %v73 = vsel %vm44, %v29, 0
  %v76 = vsel %vm44, %v30, 0
  %v79 = vsel %vm44, %v31, 0
  %v82 = vsel %vm44, %v32, 0
  %v85 = vsel %vm44, %v33, 0
  %v88 = vsel %vm44, %v34, 0
  %v91 = vsel %vm44, %v35, 0
  %93 = vmatpush.msra.mxu0 0.0
  %94 = vmatpush.msra.mxu0 0.0
  %95 = vmatpush.msra.mxu0 0.0
  %96 = vmatpush.msra.mxu0 0.0
  %97 = vmatpush.msra.mxu0 0.0
  %98 = vmatpush.msra.mxu0 0.0
  %99 = vmatpush.msra.mxu0 0.0
  %100 = vmatpush.msra.mxu0 0.0
  %101 = vmatpush.msra.mxu0 0.0
  %102 = vmatpush.msra.mxu0 0.0
  %103 = vmatpush.msra.mxu0 0.0
  %104 = vmatpush.msra.mxu0 0.0
  %105 = vmatpush.msra.mxu0 %v39
  %106 = vmatpush.msra.mxu0 %v38
  %107 = vmatpush.msra.mxu0 %v37
  %108 = vmatpush.msra.mxu0 %v36
  %109 = vmatmul.f32.gmra.mxu0 %v46
  %v110 = vpop.f32.mrf.mxu0
  %v111 = vadd.f32 %v42, %v110
  %112 = vmatmul.f32.gmra.mxu0 %v49
  %v113 = vpop.f32.mrf.mxu0
  %v114 = vadd.f32 %v42, %v113
  %115 = vmatmul.f32.gmra.mxu0 %v52
  %v116 = vpop.f32.mrf.mxu0
  %v117 = vadd.f32 %v42, %v116
  %118 = vmatmul.f32.gmra.mxu0 %v55
  %v119 = vpop.f32.mrf.mxu0
  %v120 = vadd.f32 %v42, %v119
  %121 = vmatmul.f32.gmra.mxu0 %v58
  %v122 = vpop.f32.mrf.mxu0
  %v123 = vadd.f32 %v42, %v122
  %124 = vmatmul.f32.gmra.mxu0 %v61
  %v125 = vpop.f32.mrf.mxu0
  %v126 = vadd.f32 %v42, %v125
  %127 = vmatmul.f32.gmra.mxu0 %v64
  %v128 = vpop.f32.mrf.mxu0
  %v129 = vadd.f32 %v42, %v128
  %130 = vmatmul.f32.gmra.mxu0 %v67
  %v131 = vpop.f32.mrf.mxu0
  %v132 = vadd.f32 %v42, %v131
  %133 = vmatmul.f32.gmra.mxu0 %v70
  %v134 = vpop.f32.mrf.mxu0
  %v135 = vadd.f32 %v42, %v134
  %136 = vmatmul.f32.gmra.mxu0 %v73
  %v137 = vpop.f32.mrf.mxu0
  %v138 = vadd.f32 %v42, %v137
  %139 = vmatmul.f32.gmra.mxu0 %v76
  %v140 = vpop.f32.mrf.mxu0
  %v141 = vadd.f32 %v42, %v140
  %142 = vmatmul.f32.gmra.mxu0 %v79
  %v143 = vpop.f32.mrf.mxu0
  %v144 = vadd.f32 %v42, %v143
  %145 = vmatmul.f32.gmra.mxu0 %v82
  %v146 = vpop.f32.mrf.mxu0
  %v147 = vadd.f32 %v42, %v146
  %148 = vmatmul.f32.gmra.mxu0 %v85
  %v149 = vpop.f32.mrf.mxu0
  %v150 = vadd.f32 %v42, %v149
  %151 = vmatmul.f32.gmra.mxu0 %v88
  %v152 = vpop.f32.mrf.mxu0
  %v153 = vadd.f32 %v42, %v152
  %154 = vmatmul.f32.gmra.mxu0 %v91
  %v155 = vpop.f32.mrf.mxu0
  %v156 = vadd.f32 %v42, %v155
  %157 = vdwg.mxu0
  %v158 = vtanh.pop %v111
  %v159 = vtanh.pop %v114
  %v160 = vtanh.pop %v117
  %v161 = vtanh.pop %v120
  %v162 = vtanh.pop %v123
  %v163 = vtanh.pop %v126
  %v164 = vtanh.pop %v129
  %v165 = vtanh.pop %v132
  %v166 = vtanh.pop %v135
  %v167 = vtanh.pop %v138
  %v168 = vtanh.pop %v141
  %v169 = vtanh.pop %v144
  %v170 = vtanh.pop %v147
  %v171 = vtanh.pop %v150
  %v172 = vtanh.pop %v153
  %v173 = vtanh.pop %v156
  %v174 = vld [vmem:[%s4] sm:$0x1]
  %v176 = vperm.slane %v174, 0
  %v178 = vmul.f32 %v158, %v176
  %v179 = vmul.f32 %v159, %v176
  %v180 = vmul.f32 %v160, %v176
  %v181 = vmul.f32 %v161, %v176
  %v182 = vmul.f32 %v162, %v176
  %v183 = vmul.f32 %v163, %v176
  %v184 = vmul.f32 %v164, %v176
  %v185 = vmul.f32 %v165, %v176
  %v186 = vmul.f32 %v166, %v176
  %v187 = vmul.f32 %v167, %v176
  %v188 = vmul.f32 %v168, %v176
  %v189 = vmul.f32 %v169, %v176
  %v190 = vmul.f32 %v170, %v176
  %v191 = vmul.f32 %v171, %v176
  %v192 = vmul.f32 %v172, %v176
  %v193 = vmul.f32 %v173, %v176
  %194 = vadd.xlane.f32.xlu0 %v178
  %v195 = vpop.xlane.xlu0 %194
  %196 = vadd.xlane.f32.xlu0 %v179
  %v197 = vpop.xlane.xlu0 %196
  %198 = vadd.xlane.f32.xlu0 %v180
  %v199 = vpop.xlane.xlu0 %198
  %200 = vadd.xlane.f32.xlu0 %v181
  %v201 = vpop.xlane.xlu0 %200
  %202 = vadd.xlane.f32.xlu0 %v182
  %v203 = vpop.xlane.xlu0 %202
  %204 = vadd.xlane.f32.xlu0 %v183
  %v205 = vpop.xlane.xlu0 %204
  %206 = vadd.xlane.f32.xlu0 %v184
  %v207 = vpop.xlane.xlu0 %206
  %208 = vadd.xlane.f32.xlu0 %v185
  %v209 = vpop.xlane.xlu0 %208
  %210 = vadd.xlane.f32.xlu0 %v186
  %v211 = vpop.xlane.xlu0 %210
  %212 = vadd.xlane.f32.xlu0 %v187
  %v213 = vpop.xlane.xlu0 %212
  %214 = vadd.xlane.f32.xlu0 %v188
  %v215 = vpop.xlane.xlu0 %214
  %216 = vadd.xlane.f32.xlu0 %v189
  %v217 = vpop.xlane.xlu0 %216
  %218 = vadd.xlane.f32.xlu0 %v190
  %v219 = vpop.xlane.xlu0 %218
  %220 = vadd.xlane.f32.xlu0 %v191
  %v221 = vpop.xlane.xlu0 %220
  %222 = vadd.xlane.f32.xlu0 %v192
  %v223 = vpop.xlane.xlu0 %222
  %224 = vadd.xlane.f32.xlu0 %v193
  %v225 = vpop.xlane.xlu0 %224
  %v226 = vld [vmem:[%s1] sm:$0xff]
  %v227 = vld [vmem:[%s1 + $0x8] sm:$0xff]
  %vm228 = vcmp.ne.f32.partialorder %v226, 0.0
  %vm229 = vcmp.ne.f32.partialorder %v227, 0.0
  %v246 = vlaneseq
  %v247 = vand.u32 %v246, 127
  %v248 = vperm.slane %v195, %v247
  %v249 = vperm.slane %v197, %v247
  %v250 = vperm.slane %v199, %v247
  %v251 = vperm.slane %v201, %v247
  %v252 = vperm.slane %v203, %v247
  %v253 = vperm.slane %v205, %v247
  %v254 = vperm.slane %v207, %v247
  %v255 = vperm.slane %v209, %v247
  %v256 = vperm.slane %v211, %v247
  %v257 = vperm.slane %v213, %v247
  %v258 = vperm.slane %v215, %v247
  %v259 = vperm.slane %v217, %v247
  %v260 = vperm.slane %v219, %v247
  %v261 = vperm.slane %v221, %v247
  %v262 = vperm.slane %v223, %v247
  %v263 = vperm.slane %v225, %v247
  %vm264 = vcmask 1041409
  %v265 = vsel %vm264, %v249, %v248
  %vm266 = vcmask 1042434
  %v267 = vsel %vm266, %v250, %v265
  %vm268 = vcmask 1043459
  %v269 = vsel %vm268, %v251, %v267
  %vm270 = vcmask 1044484
  %v271 = vsel %vm270, %v252, %v269
  %vm272 = vcmask 1045509
  %v273 = vsel %vm272, %v253, %v271
  %vm274 = vcmask 1046534
  %v275 = vsel %vm274, %v254, %v273
  %vm276 = vcmask 1047559
  %v277 = vsel %vm276, %v255, %v275
  %v278 = vsel %vm264, %v257, %v256
  %v279 = vsel %vm266, %v258, %v278
  %v280 = vsel %vm268, %v259, %v279
  %v281 = vsel %vm270, %v260, %v280
  %v282 = vsel %vm272, %v261, %v281
  %v283 = vsel %vm274, %v262, %v282
  %v284 = vsel %vm276, %v263, %v283
  %v287 = vsel %vm228, %v277, -1e+09
  %v288 = vsel %vm229, %v284, -1e+09
  %vm289 = vcmask 64512
  %v290 = vsel %vm289, %v287, -inf
  %291 = vmax.xlane.f32.xlu0 %v290
  %v292 = vpop.xlane.xlu0 %291
  %v293 = vsel %vm289, %v288, -inf
  %294 = vmax.xlane.f32.xlu0 %v293
  %v295 = vpop.xlane.xlu0 %294
  %v296 = vsub.f32 %v287, %v292
  %v297 = vsub.f32 %v288, %v295
  %v298 = vmul.f32 %v296, 1.442695
  %v299 = vpow.pop %v298
  %v300 = vmul.f32 %v297, 1.442695
  %v301 = vpow.pop %v300
  %v302 = vsel %vm289, %v299, 0.0
  %303 = vadd.xlane.f32.xlu0 %v302
  %v304 = vpop.xlane.xlu0 %303
  %v305 = vsel %vm289, %v301, 0.0
  %306 = vadd.xlane.f32.xlu0 %v305
  %v307 = vpop.xlane.xlu0 %306
  %v308 = vrcp.pop %v304
  %v309 = vmul.f32 %v304, %v308
  %v310 = vsub.f32 1.0, %v309
  %v311 = vmul.f32 %v308, %v310
  %v312 = vadd.f32 %v308, %v311
  %vm313 = vweird.f32 %v304
  %vm314 = vweird.f32 %v308
  %vm315 = vmor %vm313, %vm314
  %v316 = vsel %vm315, %v308, %v312
  %v317 = vand.u32 2147483647, %v304
  %vm318 = vcmp.eq.f32.partialorder %v317, 8.507059e+37
  %v319 = vand.u32 %v304, 2147483648
  %v320 = vor.u32 1.1754944e-38, %v319
  %v321 = vsel %vm318, %v320, %v316
  %v322 = vrcp.pop %v307
  %v323 = vmul.f32 %v307, %v322
  %v324 = vsub.f32 1.0, %v323
  %v325 = vmul.f32 %v322, %v324
  %v326 = vadd.f32 %v322, %v325
  %vm327 = vweird.f32 %v307
  %vm328 = vweird.f32 %v322
  %vm329 = vmor %vm327, %vm328
  %v330 = vsel %vm329, %v322, %v326
  %v331 = vand.u32 2147483647, %v307
  %vm332 = vcmp.eq.f32.partialorder %v331, 8.507059e+37
  %v333 = vand.u32 %v307, 2147483648
  %v334 = vor.u32 1.1754944e-38, %v333
  %v335 = vsel %vm332, %v334, %v330
  %v336 = vmul.f32 %v299, %v321
  %v337 = vmul.f32 %v301, %v335
  %338 = vst.msk [vmem:[%s5] sm:$0xff] %vm289, %v336
  %339 = vst.msk [vmem:[%s5 + $0x8] sm:$0xff] %vm289, %v337
  // Predicated region
  $region22: #{tpu_custom_call.1} parent=0 // pred_check
    _
  $region23: #{tpu_custom_call.1} parent=0 // pred_check_branch
    %341 = sbr.rel (0) target = $region25
  $region24: #{tpu_custom_call.1} parent=0 // pred_region
    _
  $region25: #{tpu_custom_call.1} parent=0 // pred_fallthru
    _
  // Predicated region
  $region26: #{tpu_custom_call.1} parent=0 // pred_check
    _
  $region27: #{tpu_custom_call.1} parent=0 // pred_check_branch
    %343 = sbr.rel (0) target = $region29
  $region28: #{tpu_custom_call.1} parent=0 // pred_region
    _
  $region29: #{tpu_custom_call.1} parent=0 // pred_fallthru
    _

</llo_original>
